<compile_context>
chip_gen: v7x
topology: tpu7x:2x2x1
jax: 0.10.0
libtpu: 0.0.40
codegen_flags: <defaults>
</compile_context>

<pallas_src>
import numpy as np
import jax
import jax.numpy as jnp
from jax import lax
from jax.experimental import pallas as pl
from jax.experimental.pallas import tpu as pltpu

NEG_SLOPE = 0.1


def _leaky(x):
    return jnp.where(x > 0, x, NEG_SLOPE * x)


# ----------------------------- fused Pallas kernel ---------------------------

def fused_forward_kernel(x0_ref, csv_ref,
                         a1_ref, b1_ref, a2_ref, b2_ref, a3_ref, b3_ref,
                         w1p_ref, w1c_ref, fb1_ref, w2_ref, fb2_ref,
                         out_ref):
    """Whole SimpleModel forward for one batch block; every contraction on the
    MXU, every intermediate a lane-dense (TN, K) f32 slab."""
    def dot(a, b):
        return jnp.dot(a, b, preferred_element_type=jnp.float32)

    # conv1 / conv2 / conv3 as dense lowered-conv matmuls + LeakyReLU selects
    x1 = _leaky(dot(x0_ref[...], a1_ref[...]) + b1_ref[...])   # (TN, 4*8*8=256)
    x2 = _leaky(dot(x1, a2_ref[...]) + b2_ref[...])            # (TN, 8*4*4=128)
    x3 = _leaky(dot(x2, a3_ref[...]) + b3_ref[...])            # (TN, 16*2*2=64)

    # global-avg-pool is folded into w1p (wrapper side); concat([pool, csv])
    # is split into two dots.
    h = _leaky(dot(x3, w1p_ref[...]) + dot(csv_ref[...], w1c_ref[...])
               + fb1_ref[...])                                  # (TN, 32)
    # Final store: last dim (num_classes) < 128 -> masked store; negligible.
    out_ref[...] = dot(h, w2_ref[...]) + fb2_ref[...]           # (TN, classes)


# ----------------------------- wrapper-side weight prep ----------------------

def _lowered_conv_matrix(w, hin, win):
    """w: (3, 3, cin, cout) HWIO weights of a stride-2 / pad-1 conv.

    Returns A of shape (cin*hin*win, cout*hout*wout) such that
        flat_out = flat_in @ A      (flat index order = channel-major, then
                                     row-major spatial)
    is exactly the conv.  Built by an exact gather (each A entry is either 0
    or a single weight value — no float accumulation), batch-independent."""
    kh, kw, cin, cout = w.shape
    hout, wout = hin // 2, win // 2
    # tmap[x, y] = tap index feeding output position y from input position x,
    # or kh*kw ("no tap" -> zero row of the extended weight table).
    tmap = np.full((hin * win, hout * wout), kh * kw, dtype=np.int32)
    r = np.arange(hout)
    s = np.arange(wout)
    for di in range(kh):
        for dj in range(kw):
            hh = 2 * r + di - 1
            ww = 2 * s + dj - 1
            rv = np.nonzero((hh >= 0) & (hh < hin))[0]
            sv = np.nonzero((ww >= 0) & (ww < win))[0]
            rr, ss = np.meshgrid(rv, sv, indexing="ij")
            x_idx = (hh[rr] * win + ww[ss]).reshape(-1)
            y_idx = (rr * wout + ss).reshape(-1)
            tmap[x_idx, y_idx] = di * kw + dj
    w_ext = jnp.concatenate(
        [w.astype(jnp.float32).reshape(kh * kw, cin, cout),
         jnp.zeros((1, cin, cout), jnp.float32)], axis=0)        # (10, cin, cout)
    a4 = jnp.take(w_ext, jnp.asarray(tmap.reshape(-1)), axis=0)
    a4 = a4.reshape(hin * win, hout * wout, cin, cout)
    return jnp.transpose(a4, (2, 0, 3, 1)).reshape(cin * hin * win,
                                                   cout * hout * wout)


def _prep_operands(params, hh, ww):
    """Batch-independent weight preprocessing (exact layout folds only)."""
    c3 = params["conv3_w"].shape[-1]
    h1, w1 = hh // 2, ww // 2
    h2, w2 = h1 // 2, w1 // 2
    h3, w3 = h2 // 2, w2 // 2

    a1 = _lowered_conv_matrix(params["conv1_w"], hh, ww)
    a2 = _lowered_conv_matrix(params["conv2_w"], h1, w1)
    a3 = _lowered_conv_matrix(params["conv3_w"], h2, w2)
    b1 = jnp.repeat(params["conv1_b"].astype(jnp.float32), h1 * w1)[None, :]
    b2 = jnp.repeat(params["conv2_b"].astype(jnp.float32), h2 * w2)[None, :]
    b3 = jnp.repeat(params["conv3_b"].astype(jnp.float32), h3 * w3)[None, :]

    # Fold global average pooling into the pooled-feature slice of fc1's
    # weight: (pool @ W)[c*hw + p, :] == W[c, :] / hw   (exact, no matmul).
    hw3 = h3 * w3
    w1p = jnp.repeat(params["fc1_w"][:c3].astype(jnp.float32), hw3, axis=0) / hw3

    # csv slice of fc1; pad the contraction dim up to a multiple of 8.
    w1c = params["fc1_w"][c3:].astype(jnp.float32)
    csv_dim = w1c.shape[0]
    csv_k = ((csv_dim + 7) // 8) * 8
    w1c = jnp.pad(w1c, ((0, csv_k - csv_dim), (0, 0)))

    fb1 = params["fc1_b"].astype(jnp.float32)[None, :]
    w2 = params["fc2_w"].astype(jnp.float32)
    fb2 = params["fc2_b"].astype(jnp.float32)[None, :]
    return (a1, b1, a2, b2, a3, b3, w1p, w1c, fb1, w2, fb2), csv_dim, csv_k


# ----------------------------- forward ---------------------------------------

@jax.jit
def simple_model_forward(x_spec, x_csv, params):
    if x_spec.ndim == 3:                       # mirror the .unsqueeze(1) branch
        x_spec = x_spec[:, None, :, :]
    n, _, hh, ww = x_spec.shape
    x0 = x_spec.astype(jnp.float32).reshape(n, -1)          # (N, Cin*H*W), Cin==1

    ops, csv_dim, csv_k = _prep_operands(params, hh, ww)
    csv = x_csv.astype(jnp.float32)
    csv = jnp.pad(csv, ((0, 0), (0, csv_k - csv_dim)))      # K-dim 8-aligned
    num_classes = ops[-2].shape[1]

    # Batch tiling: one block when N <= 128, otherwise 128-row (8-aligned)
    # blocks over a parallel grid axis (both v7x TensorCores busy; BlockSpec
    # double-buffering hides the HBM->VMEM DMA of x0/csv on v5e/v6e).
    if n <= 128:
        tn, n_pad = n, n
    else:
        tn = 128
        n_pad = ((n + tn - 1) // tn) * tn
    if n_pad != n:
        x0 = jnp.pad(x0, ((0, n_pad - n), (0, 0)))
        csv = jnp.pad(csv, ((0, n_pad - n), (0, 0)))
    grid = (n_pad // tn,)

    def batch_spec(cols):
        return pl.BlockSpec((tn, cols), lambda i: (i, 0))

    def full_spec(arr):
        return pl.BlockSpec(arr.shape, lambda i: (0, 0))     # fetched once

    out = pl.pallas_call(
        fused_forward_kernel,
        out_shape=jax.ShapeDtypeStruct((n_pad, num_classes), jnp.float32),
        grid=grid,
        in_specs=[batch_spec(x0.shape[1]), batch_spec(csv_k)]
                 + [full_spec(a) for a in ops],
        out_specs=batch_spec(num_classes),
        compiler_params=pltpu.CompilerParams(
            dimension_semantics=("parallel",)),
    )(x0, csv, *ops)
    return out[:n]


# ----------------------------- params / reference ----------------------------

def init_params(key, input_size=6, num_classes=6):
    ks = jax.random.split(key, 5)

    def conv_w(k, kh, kw, cin, cout):
        fan_out = cout * kh * kw
        std = (2.0 / fan_out) ** 0.5          # kaiming_normal_, fan_out, relu
        return std * jax.random.normal(k, (kh, kw, cin, cout), jnp.float32)

    def lin_w(k, fin, fout):
        std = (2.0 / (fin + fout)) ** 0.5     # xavier_normal_
        return std * jax.random.normal(k, (fin, fout), jnp.float32)

    return dict(
        conv1_w=conv_w(ks[0], 3, 3, 1, 4),  conv1_b=jnp.zeros((4,), jnp.float32),
        conv2_w=conv_w(ks[1], 3, 3, 4, 8),  conv2_b=jnp.zeros((8,), jnp.float32),
        conv3_w=conv_w(ks[2], 3, 3, 8, 16), conv3_b=jnp.zeros((16,), jnp.float32),
        fc1_w=lin_w(ks[3], 16 + input_size, 32),
        fc1_b=jnp.zeros((32,), jnp.float32),
        fc2_w=lin_w(ks[4], 32, num_classes),
        fc2_b=jnp.zeros((num_classes,), jnp.float32),
    )


def reference_forward(x_spec, x_csv, params):
    if x_spec.ndim == 3:
        x_spec = x_spec[:, None, :, :]
    x = jnp.transpose(x_spec, (0, 2, 3, 1)).astype(jnp.float32)
    for wname, bname in (("conv1_w", "conv1_b"), ("conv2_w", "conv2_b"),
                         ("conv3_w", "conv3_b")):
        x = lax.conv_general_dilated(
            x, params[wname], window_strides=(2, 2), padding=[(1, 1), (1, 1)],
            dimension_numbers=("NHWC", "HWIO", "NHWC"),
            precision=lax.Precision.HIGHEST)
        x = _leaky(x + params[bname])
    pooled = jnp.mean(x, axis=(1, 2))
    z = jnp.concatenate([pooled, x_csv.astype(jnp.float32)], axis=1)
    h = _leaky(jnp.dot(z, params["fc1_w"], precision=lax.Precision.HIGHEST)
               + params["fc1_b"])
    return (jnp.dot(h, params["fc2_w"], precision=lax.Precision.HIGHEST)
            + params["fc2_b"])


# ----------------------------- main -------------------------------------------

if __name__ == "__main__":
    key = jax.random.PRNGKey(0)
    kp, kx, kc = jax.random.split(key, 3)
    params = init_params(kp)
    x_spec = jax.random.normal(kx, (2, 1, 16, 16), jnp.float32)   # NCHW input
    x_csv = jax.random.normal(kc, (2, 6), jnp.float32)

    out = jax.block_until_ready(simple_model_forward(x_spec, x_csv, params))
    ref = reference_forward(x_spec, x_csv, params)

    assert out.shape == (2, 6), out.shape
    assert bool(jnp.all(jnp.isfinite(out)))
    # MXU accumulation order differs from the lax.conv reference -> 1e-3 tol.
    assert bool(jnp.allclose(out, ref, atol=1e-3, rtol=1e-3)), (out, ref)
    print("KERNEL_OK")
</pallas_src>

<mosaic_0001>
module attributes {stable_mosaic.version = 11 : i64} {
  func.func @fused_forward_kernel(%arg0: i32, %arg1: memref<2x256xf32, #tpu.memory_space<vmem>>, %arg2: memref<2x8xf32, #tpu.memory_space<vmem>>, %arg3: memref<256x256xf32, #tpu.memory_space<vmem>>, %arg4: memref<1x256xf32, #tpu.memory_space<vmem>>, %arg5: memref<256x128xf32, #tpu.memory_space<vmem>>, %arg6: memref<1x128xf32, #tpu.memory_space<vmem>>, %arg7: memref<128x64xf32, #tpu.memory_space<vmem>>, %arg8: memref<1x64xf32, #tpu.memory_space<vmem>>, %arg9: memref<64x32xf32, #tpu.memory_space<vmem>>, %arg10: memref<8x32xf32, #tpu.memory_space<vmem>>, %arg11: memref<1x32xf32, #tpu.memory_space<vmem>>, %arg12: memref<32x6xf32, #tpu.memory_space<vmem>>, %arg13: memref<1x6xf32, #tpu.memory_space<vmem>>, %arg14: memref<2x6xf32, #tpu.memory_space<vmem>>) attributes {dimension_semantics = [#tpu.dimension_semantics<parallel>], iteration_bounds = array<i64: 1>, scalar_prefetch = 0 : i64, scratch_operands = 0 : i64, tpu.core_type = #tpu.core_type<tc>, window_params = [{transform_indices = @transform_0, window_bounds = array<i64: 2, 256>}, {transform_indices = @transform_1, window_bounds = array<i64: 2, 8>}, {pipeline_mode = #tpu.pipeline_mode<synchronous>, transform_indices = @transform_2, window_bounds = array<i64: 256, 256>}, {pipeline_mode = #tpu.pipeline_mode<synchronous>, transform_indices = @transform_3, window_bounds = array<i64: 1, 256>}, {pipeline_mode = #tpu.pipeline_mode<synchronous>, transform_indices = @transform_4, window_bounds = array<i64: 256, 128>}, {pipeline_mode = #tpu.pipeline_mode<synchronous>, transform_indices = @transform_5, window_bounds = array<i64: 1, 128>}, {pipeline_mode = #tpu.pipeline_mode<synchronous>, transform_indices = @transform_6, window_bounds = array<i64: 128, 64>}, {pipeline_mode = #tpu.pipeline_mode<synchronous>, transform_indices = @transform_7, window_bounds = array<i64: 1, 64>}, {pipeline_mode = #tpu.pipeline_mode<synchronous>, transform_indices = @transform_8, window_bounds = array<i64: 64, 32>}, {pipeline_mode = #tpu.pipeline_mode<synchronous>, transform_indices = @transform_9, window_bounds = array<i64: 8, 32>}, {pipeline_mode = #tpu.pipeline_mode<synchronous>, transform_indices = @transform_10, window_bounds = array<i64: 1, 32>}, {pipeline_mode = #tpu.pipeline_mode<synchronous>, transform_indices = @transform_11, window_bounds = array<i64: 32, 6>}, {pipeline_mode = #tpu.pipeline_mode<synchronous>, transform_indices = @transform_12, window_bounds = array<i64: 1, 6>}, {transform_indices = @transform_13, window_bounds = array<i64: 2, 6>}]} {
    %c0 = arith.constant 0 : index
    %c0_0 = arith.constant 0 : index
    %0 = vector.load %arg1[%c0, %c0_0] : memref<2x256xf32, #tpu.memory_space<vmem>>, vector<2x256xf32>
    %c0_1 = arith.constant 0 : index
    %c0_2 = arith.constant 0 : index
    %1 = vector.load %arg3[%c0_1, %c0_2] : memref<256x256xf32, #tpu.memory_space<vmem>>, vector<256x256xf32>
    %cst = arith.constant dense<0.000000e+00> : vector<2x256xf32>
    %2 = tpu.matmul %0, %1, %cst {dimension_numbers = #tpu.dot_dimension_numbers<[1], [0], [0], [1], [0, 0, 1, 1], [], []>} : vector<2x256xf32>, vector<256x256xf32>, vector<2x256xf32> -> vector<2x256xf32>
    %c0_3 = arith.constant 0 : index
    %c0_4 = arith.constant 0 : index
    %3 = vector.load %arg4[%c0_3, %c0_4] : memref<1x256xf32, #tpu.memory_space<vmem>>, vector<1x256xf32>
    %4 = vector.broadcast %3 : vector<1x256xf32> to vector<2x256xf32>
    %5 = arith.addf %2, %4 : vector<2x256xf32>
    %cst_5 = arith.constant 0.000000e+00 : f32
    %6 = vector.broadcast %cst_5 : f32 to vector<2x256xf32>
    %7 = arith.cmpf ogt, %5, %6 : vector<2x256xf32>
    %cst_6 = arith.constant 1.000000e-01 : f32
    %8 = vector.broadcast %cst_6 : f32 to vector<2x256xf32>
    %9 = arith.mulf %8, %5 : vector<2x256xf32>
    %10 = arith.select %7, %5, %9 : vector<2x256xi1>, vector<2x256xf32>
    %c0_7 = arith.constant 0 : index
    %c0_8 = arith.constant 0 : index
    %11 = vector.load %arg5[%c0_7, %c0_8] : memref<256x128xf32, #tpu.memory_space<vmem>>, vector<256x128xf32>
    %cst_9 = arith.constant dense<0.000000e+00> : vector<2x128xf32>
    %12 = tpu.matmul %10, %11, %cst_9 {dimension_numbers = #tpu.dot_dimension_numbers<[1], [0], [0], [1], [0, 0, 1, 1], [], []>} : vector<2x256xf32>, vector<256x128xf32>, vector<2x128xf32> -> vector<2x128xf32>
    %c0_10 = arith.constant 0 : index
    %c0_11 = arith.constant 0 : index
    %13 = vector.load %arg6[%c0_10, %c0_11] : memref<1x128xf32, #tpu.memory_space<vmem>>, vector<1x128xf32>
    %14 = vector.broadcast %13 : vector<1x128xf32> to vector<2x128xf32>
    %15 = arith.addf %12, %14 : vector<2x128xf32>
    %cst_12 = arith.constant 0.000000e+00 : f32
    %16 = vector.broadcast %cst_12 : f32 to vector<2x128xf32>
    %17 = arith.cmpf ogt, %15, %16 : vector<2x128xf32>
    %cst_13 = arith.constant 1.000000e-01 : f32
    %18 = vector.broadcast %cst_13 : f32 to vector<2x128xf32>
    %19 = arith.mulf %18, %15 : vector<2x128xf32>
    %20 = arith.select %17, %15, %19 : vector<2x128xi1>, vector<2x128xf32>
    %c0_14 = arith.constant 0 : index
    %c0_15 = arith.constant 0 : index
    %21 = vector.load %arg7[%c0_14, %c0_15] : memref<128x64xf32, #tpu.memory_space<vmem>>, vector<128x64xf32>
    %cst_16 = arith.constant dense<0.000000e+00> : vector<2x64xf32>
    %22 = tpu.matmul %20, %21, %cst_16 {dimension_numbers = #tpu.dot_dimension_numbers<[1], [0], [0], [1], [0, 0, 1, 1], [], []>} : vector<2x128xf32>, vector<128x64xf32>, vector<2x64xf32> -> vector<2x64xf32>
    %c0_17 = arith.constant 0 : index
    %c0_18 = arith.constant 0 : index
    %23 = vector.load %arg8[%c0_17, %c0_18] : memref<1x64xf32, #tpu.memory_space<vmem>>, vector<1x64xf32>
    %24 = vector.broadcast %23 : vector<1x64xf32> to vector<2x64xf32>
    %25 = arith.addf %22, %24 : vector<2x64xf32>
    %cst_19 = arith.constant 0.000000e+00 : f32
    %26 = vector.broadcast %cst_19 : f32 to vector<2x64xf32>
    %27 = arith.cmpf ogt, %25, %26 : vector<2x64xf32>
    %cst_20 = arith.constant 1.000000e-01 : f32
    %28 = vector.broadcast %cst_20 : f32 to vector<2x64xf32>
    %29 = arith.mulf %28, %25 : vector<2x64xf32>
    %30 = arith.select %27, %25, %29 : vector<2x64xi1>, vector<2x64xf32>
    %c0_21 = arith.constant 0 : index
    %c0_22 = arith.constant 0 : index
    %31 = vector.load %arg9[%c0_21, %c0_22] : memref<64x32xf32, #tpu.memory_space<vmem>>, vector<64x32xf32>
    %cst_23 = arith.constant dense<0.000000e+00> : vector<2x32xf32>
    %32 = tpu.matmul %30, %31, %cst_23 {dimension_numbers = #tpu.dot_dimension_numbers<[1], [0], [0], [1], [0, 0, 1, 1], [], []>} : vector<2x64xf32>, vector<64x32xf32>, vector<2x32xf32> -> vector<2x32xf32>
    %c0_24 = arith.constant 0 : index
    %c0_25 = arith.constant 0 : index
    %33 = vector.load %arg2[%c0_24, %c0_25] : memref<2x8xf32, #tpu.memory_space<vmem>>, vector<2x8xf32>
    %c0_26 = arith.constant 0 : index
    %c0_27 = arith.constant 0 : index
    %34 = vector.load %arg10[%c0_26, %c0_27] : memref<8x32xf32, #tpu.memory_space<vmem>>, vector<8x32xf32>
    %cst_28 = arith.constant dense<0.000000e+00> : vector<2x32xf32>
    %35 = tpu.matmul %33, %34, %cst_28 {dimension_numbers = #tpu.dot_dimension_numbers<[1], [0], [0], [1], [0, 0, 1, 1], [], []>} : vector<2x8xf32>, vector<8x32xf32>, vector<2x32xf32> -> vector<2x32xf32>
    %36 = arith.addf %32, %35 : vector<2x32xf32>
    %c0_29 = arith.constant 0 : index
    %c0_30 = arith.constant 0 : index
    %37 = vector.load %arg11[%c0_29, %c0_30] : memref<1x32xf32, #tpu.memory_space<vmem>>, vector<1x32xf32>
    %38 = vector.broadcast %37 : vector<1x32xf32> to vector<2x32xf32>
    %39 = arith.addf %36, %38 : vector<2x32xf32>
    %cst_31 = arith.constant 0.000000e+00 : f32
    %40 = vector.broadcast %cst_31 : f32 to vector<2x32xf32>
    %41 = arith.cmpf ogt, %39, %40 : vector<2x32xf32>
    %cst_32 = arith.constant 1.000000e-01 : f32
    %42 = vector.broadcast %cst_32 : f32 to vector<2x32xf32>
    %43 = arith.mulf %42, %39 : vector<2x32xf32>
    %44 = arith.select %41, %39, %43 : vector<2x32xi1>, vector<2x32xf32>
    %c0_33 = arith.constant 0 : index
    %c0_34 = arith.constant 0 : index
    %45 = vector.load %arg12[%c0_33, %c0_34] : memref<32x6xf32, #tpu.memory_space<vmem>>, vector<32x6xf32>
    %cst_35 = arith.constant dense<0.000000e+00> : vector<2x6xf32>
    %46 = tpu.matmul %44, %45, %cst_35 {dimension_numbers = #tpu.dot_dimension_numbers<[1], [0], [0], [1], [0, 0, 1, 1], [], []>} : vector<2x32xf32>, vector<32x6xf32>, vector<2x6xf32> -> vector<2x6xf32>
    %c0_36 = arith.constant 0 : index
    %c0_37 = arith.constant 0 : index
    %47 = vector.load %arg13[%c0_36, %c0_37] : memref<1x6xf32, #tpu.memory_space<vmem>>, vector<1x6xf32>
    %48 = vector.broadcast %47 : vector<1x6xf32> to vector<2x6xf32>
    %49 = arith.addf %46, %48 : vector<2x6xf32>
    %c0_38 = arith.constant 0 : index
    %c0_39 = arith.constant 0 : index
    %50 = vector.load %arg14[%c0_38, %c0_39] : memref<2x6xf32, #tpu.memory_space<vmem>>, vector<2x6xf32>
    tpu.vector_store %arg14[%c0_38, %c0_39], %49 {strides = array<i32>} : memref<2x6xf32, #tpu.memory_space<vmem>>, vector<2x6xf32>,
    return
  }
  func.func @transform_0(%arg0: i32) -> (i32, i32) {
    %c0_i32 = arith.constant 0 : i32
    %c0_i32_0 = arith.constant 0 : i32
    return %arg0, %c0_i32 : i32, i32
  }
  func.func @transform_1(%arg0: i32) -> (i32, i32) {
    %c0_i32 = arith.constant 0 : i32
    %c0_i32_0 = arith.constant 0 : i32
    return %arg0, %c0_i32 : i32, i32
  }
  func.func @transform_2(%arg0: i32) -> (i32, i32) {
    %c0_i32 = arith.constant 0 : i32
    %c0_i32_0 = arith.constant 0 : i32
    %c0_i32_1 = arith.constant 0 : i32
    return %c0_i32, %c0_i32_0 : i32, i32
  }
  func.func @transform_3(%arg0: i32) -> (i32, i32) {
    %c0_i32 = arith.constant 0 : i32
    %c0_i32_0 = arith.constant 0 : i32
    %c0_i32_1 = arith.constant 0 : i32
    return %c0_i32, %c0_i32_0 : i32, i32
  }
  func.func @transform_4(%arg0: i32) -> (i32, i32) {
    %c0_i32 = arith.constant 0 : i32
    %c0_i32_0 = arith.constant 0 : i32
    %c0_i32_1 = arith.constant 0 : i32
    return %c0_i32, %c0_i32_0 : i32, i32
  }
  func.func @transform_5(%arg0: i32) -> (i32, i32) {
    %c0_i32 = arith.constant 0 : i32
    %c0_i32_0 = arith.constant 0 : i32
    %c0_i32_1 = arith.constant 0 : i32
    return %c0_i32, %c0_i32_0 : i32, i32
  }
  func.func @transform_6(%arg0: i32) -> (i32, i32) {
    %c0_i32 = arith.constant 0 : i32
    %c0_i32_0 = arith.constant 0 : i32
    %c0_i32_1 = arith.constant 0 : i32
    return %c0_i32, %c0_i32_0 : i32, i32
  }
  func.func @transform_7(%arg0: i32) -> (i32, i32) {
    %c0_i32 = arith.constant 0 : i32
    %c0_i32_0 = arith.constant 0 : i32
    %c0_i32_1 = arith.constant 0 : i32
    return %c0_i32, %c0_i32_0 : i32, i32
  }
  func.func @transform_8(%arg0: i32) -> (i32, i32) {
    %c0_i32 = arith.constant 0 : i32
    %c0_i32_0 = arith.constant 0 : i32
    %c0_i32_1 = arith.constant 0 : i32
    return %c0_i32, %c0_i32_0 : i32, i32
  }
  func.func @transform_9(%arg0: i32) -> (i32, i32) {
    %c0_i32 = arith.constant 0 : i32
    %c0_i32_0 = arith.constant 0 : i32
    %c0_i32_1 = arith.constant 0 : i32
    return %c0_i32, %c0_i32_0 : i32, i32
  }
  func.func @transform_10(%arg0: i32) -> (i32, i32) {
    %c0_i32 = arith.constant 0 : i32
    %c0_i32_0 = arith.constant 0 : i32
    %c0_i32_1 = arith.constant 0 : i32
    return %c0_i32, %c0_i32_0 : i32, i32
  }
  func.func @transform_11(%arg0: i32) -> (i32, i32) {
    %c0_i32 = arith.constant 0 : i32
    %c0_i32_0 = arith.constant 0 : i32
    %c0_i32_1 = arith.constant 0 : i32
    return %c0_i32, %c0_i32_0 : i32, i32
  }
  func.func @transform_12(%arg0: i32) -> (i32, i32) {
    %c0_i32 = arith.constant 0 : i32
    %c0_i32_0 = arith.constant 0 : i32
    %c0_i32_1 = arith.constant 0 : i32
    return %c0_i32, %c0_i32_0 : i32, i32
  }
  func.func @transform_13(%arg0: i32) -> (i32, i32) {
    %c0_i32 = arith.constant 0 : i32
    %c0_i32_0 = arith.constant 0 : i32
    return %arg0, %c0_i32 : i32, i32
  }
}

</mosaic_0001>

<llo_original>
// kernel: simple_model_forward.1
$region0: #{simple_model_forward.1}
  #allocation0 [shape = 'u32[]', space=smem, size = 0x4, offset = 0x4, fixed_abs, tag = 'smem constant byte address 0x4 - core index']
  #allocation1 [shape = 'u32[144,128]{1,0:T(1,128)}', space=vmem, size = 0x12000, scoped, tag = 'internal scratch']
  %s0 = inlined_call_operand.vmem [shape: f32[2,256], index: 0, kind: input, shape index: {}]
  %s1 = inlined_call_operand.vmem [shape: f32[2,8], index: 1, kind: input, shape index: {}]
  %s2 = inlined_call_operand.vmem [shape: f32[256,256], index: 2, kind: input, shape index: {}]
  %s3 = inlined_call_operand.vmem [shape: f32[1,256], index: 3, kind: input, shape index: {}]
  %s4 = inlined_call_operand.vmem [shape: f32[256,128], index: 4, kind: input, shape index: {}]
  %s5 = inlined_call_operand.vmem [shape: f32[1,128], index: 5, kind: input, shape index: {}]
  %s6 = inlined_call_operand.vmem [shape: f32[128,64], index: 6, kind: input, shape index: {}]
  %s7 = inlined_call_operand.vmem [shape: f32[1,64], index: 7, kind: input, shape index: {}]
  %s8 = inlined_call_operand.vmem [shape: f32[64,32], index: 8, kind: input, shape index: {}]
  %s9 = inlined_call_operand.vmem [shape: f32[8,32], index: 9, kind: input, shape index: {}]
  %s10 = inlined_call_operand.vmem [shape: f32[1,32], index: 10, kind: input, shape index: {}]
  %s11 = inlined_call_operand.vmem [shape: f32[32,6], index: 11, kind: input, shape index: {}]
  %s12 = inlined_call_operand.vmem [shape: f32[1,6], index: 12, kind: input, shape index: {}]
  %s13 = inlined_call_operand.hbm [shape: f32[2,6], index: 13, kind: output, shape index: {}]
  %s14 = sld [smem:[#allocation0]]
  $region62: #{simple_model_forward.1} parent=0
    _
  %s16 = ssub.s32 1, %s14
  %s17 = scalar_select 0, %s16, %s14
  $region1: #{simple_model_forward.1} parent=0
    #allocation2 [shape = 'u8[1024]{0}', space=vmem, size = 0x400, scoped, tag = 'output window, operand 0, single buffered']
    #allocation3 [shape = 's32[1]{0}', space=sflag, size = 0x4, scoped, tag = 'scoped memory for simple_model_forward.1']
    %18 = vsyncpa [#allocation3], 0
    // Predicated region
    $region2: #{simple_model_forward.1} parent=1 // pred_check
      _
    $region3: #{simple_model_forward.1} parent=1 // pred_check_branch
      %20 = sbr.rel (0) target = $region5
    $region4: #{simple_model_forward.1} parent=1 // pred_region
      _
    $region5: #{simple_model_forward.1} parent=1 // pred_fallthru
      _
    // Predicated region
    $region6: #{simple_model_forward.1} parent=1 // pred_check
      _
    $region7: #{simple_model_forward.1} parent=1 // pred_check_branch
      %22 = sbr.rel (0) target = $region9
    $region8: #{simple_model_forward.1} parent=1 // pred_region
      _
    $region9: #{simple_model_forward.1} parent=1 // pred_fallthru
      _
    // Predicated region
    $region10: #{simple_model_forward.1} parent=1 // pred_check
      _
    $region11: #{simple_model_forward.1} parent=1 // pred_check_branch
      %24 = sbr.rel (0) target = $region13
    $region12: #{simple_model_forward.1} parent=1 // pred_region
      _
    $region13: #{simple_model_forward.1} parent=1 // pred_fallthru
      _
    // Predicated region
    $region14: #{simple_model_forward.1} parent=1 // pred_check
      _
    $region15: #{simple_model_forward.1} parent=1 // pred_check_branch
      %26 = sbr.rel (0) target = $region17
    $region16: #{simple_model_forward.1} parent=1 // pred_region
      _
    $region17: #{simple_model_forward.1} parent=1 // pred_fallthru
      _
    // Predicated region
    $region18: #{simple_model_forward.1} parent=1 // pred_check
      _
    $region19: #{simple_model_forward.1} parent=1 // pred_check_branch
      %28 = sbr.rel (0) target = $region21
    $region20: #{simple_model_forward.1} parent=1 // pred_region
      _
    $region21: #{simple_model_forward.1} parent=1 // pred_fallthru
      _
    // Predicated region
    $region22: #{simple_model_forward.1} parent=1 // pred_check
      _
    $region23: #{simple_model_forward.1} parent=1 // pred_check_branch
      %30 = sbr.rel (0) target = $region25
    $region24: #{simple_model_forward.1} parent=1 // pred_region
      _
    $region25: #{simple_model_forward.1} parent=1 // pred_fallthru
      _
    // Predicated region
    $region26: #{simple_model_forward.1} parent=1 // pred_check
      _
    $region27: #{simple_model_forward.1} parent=1 // pred_check_branch
      %32 = sbr.rel (0) target = $region29
    $region28: #{simple_model_forward.1} parent=1 // pred_region
      _
    $region29: #{simple_model_forward.1} parent=1 // pred_fallthru
      _
    // Predicated region
    $region30: #{simple_model_forward.1} parent=1 // pred_check
      _
    $region31: #{simple_model_forward.1} parent=1 // pred_check_branch
      %34 = sbr.rel (0) target = $region33
    $region32: #{simple_model_forward.1} parent=1 // pred_region
      _
    $region33: #{simple_model_forward.1} parent=1 // pred_fallthru
      _
    // Predicated region
    $region34: #{simple_model_forward.1} parent=1 // pred_check
      _
    $region35: #{simple_model_forward.1} parent=1 // pred_check_branch
      %36 = sbr.rel (0) target = $region37
    $region36: #{simple_model_forward.1} parent=1 // pred_region
      _
    $region37: #{simple_model_forward.1} parent=1 // pred_fallthru
      _
    // Predicated region
    $region38: #{simple_model_forward.1} parent=1 // pred_check
      _
    $region39: #{simple_model_forward.1} parent=1 // pred_check_branch
      %38 = sbr.rel (0) target = $region41
    $region40: #{simple_model_forward.1} parent=1 // pred_region
      _
    $region41: #{simple_model_forward.1} parent=1 // pred_fallthru
      _
    // Predicated region
    $region42: #{simple_model_forward.1} parent=1 // pred_check
      _
    $region43: #{simple_model_forward.1} parent=1 // pred_check_branch
      %40 = sbr.rel (0) target = $region45
    $region44: #{simple_model_forward.1} parent=1 // pred_region
      _
    $region45: #{simple_model_forward.1} parent=1 // pred_fallthru
      _
    // Predicated region
    $region46: #{simple_model_forward.1} parent=1 // pred_check
      _
    $region47: #{simple_model_forward.1} parent=1 // pred_check_branch
      %42 = sbr.rel (0) target = $region49
    $region48: #{simple_model_forward.1} parent=1 // pred_region
      _
    $region49: #{simple_model_forward.1} parent=1 // pred_fallthru
      _
    // Predicated region
    $region50: #{simple_model_forward.1} parent=1 // pred_check
      _
    $region51: #{simple_model_forward.1} parent=1 // pred_check_branch
      %44 = sbr.rel (0) target = $region53
    $region52: #{simple_model_forward.1} parent=1 // pred_region
      _
    $region53: #{simple_model_forward.1} parent=1 // pred_fallthru
      _
    %v45 = vld [vmem:[%s0] sm:$0xf]
    %v46 = vld [vmem:[%s2] sm:$0xff]
    %v47 = vld [vmem:[%s2 + $0x8] sm:$0xff]
    %v48 = vld [vmem:[%s2 + $0x10] sm:$0xff]
    %v49 = vld [vmem:[%s2 + $0x18] sm:$0xff]
    %v50 = vld [vmem:[%s2 + $0x20] sm:$0xff]
    %v51 = vld [vmem:[%s2 + $0x28] sm:$0xff]
    %v52 = vld [vmem:[%s2 + $0x30] sm:$0xff]
    %v53 = vld [vmem:[%s2 + $0x38] sm:$0xff]
    %v54 = vld [vmem:[%s2 + $0x40] sm:$0xff]
    %v55 = vld [vmem:[%s2 + $0x48] sm:$0xff]
    %v56 = vld [vmem:[%s2 + $0x50] sm:$0xff]
    %v57 = vld [vmem:[%s2 + $0x58] sm:$0xff]
    %v58 = vld [vmem:[%s2 + $0x60] sm:$0xff]
    %v59 = vld [vmem:[%s2 + $0x68] sm:$0xff]
    %v60 = vld [vmem:[%s2 + $0x70] sm:$0xff]
    %v61 = vld [vmem:[%s2 + $0x78] sm:$0xff]
    %v62 = vld [vmem:[%s2 + $0x80] sm:$0xff]
    %v63 = vld [vmem:[%s2 + $0x88] sm:$0xff]
    %v64 = vld [vmem:[%s2 + $0x90] sm:$0xff]
    %v65 = vld [vmem:[%s2 + $0x98] sm:$0xff]
    %v66 = vld [vmem:[%s2 + $0xa0] sm:$0xff]
    %v67 = vld [vmem:[%s2 + $0xa8] sm:$0xff]
    %v68 = vld [vmem:[%s2 + $0xb0] sm:$0xff]
    %v69 = vld [vmem:[%s2 + $0xb8] sm:$0xff]
    %v70 = vld [vmem:[%s2 + $0xc0] sm:$0xff]
    %v71 = vld [vmem:[%s2 + $0xc8] sm:$0xff]
    %v72 = vld [vmem:[%s2 + $0xd0] sm:$0xff]
    %v73 = vld [vmem:[%s2 + $0xd8] sm:$0xff]
    %v74 = vld [vmem:[%s2 + $0xe0] sm:$0xff]
    %v75 = vld [vmem:[%s2 + $0xe8] sm:$0xff]
    %v76 = vld [vmem:[%s2 + $0xf0] sm:$0xff]
    %v77 = vld [vmem:[%s2 + $0xf8] sm:$0xff]
    %v78 = vld [vmem:[%s2 + $0x100] sm:$0xff]
    %v79 = vld [vmem:[%s2 + $0x108] sm:$0xff]
    %v80 = vld [vmem:[%s2 + $0x110] sm:$0xff]
    %v81 = vld [vmem:[%s2 + $0x118] sm:$0xff]
    %v82 = vld [vmem:[%s2 + $0x120] sm:$0xff]
    %v83 = vld [vmem:[%s2 + $0x128] sm:$0xff]
    %v84 = vld [vmem:[%s2 + $0x130] sm:$0xff]
    %v85 = vld [vmem:[%s2 + $0x138] sm:$0xff]
    %v86 = vld [vmem:[%s2 + $0x140] sm:$0xff]
    %v87 = vld [vmem:[%s2 + $0x148] sm:$0xff]
    %v88 = vld [vmem:[%s2 + $0x150] sm:$0xff]
    %v89 = vld [vmem:[%s2 + $0x158] sm:$0xff]
    %v90 = vld [vmem:[%s2 + $0x160] sm:$0xff]
    %v91 = vld [vmem:[%s2 + $0x168] sm:$0xff]
    %v92 = vld [vmem:[%s2 + $0x170] sm:$0xff]
    %v93 = vld [vmem:[%s2 + $0x178] sm:$0xff]
    %v94 = vld [vmem:[%s2 + $0x180] sm:$0xff]
    %v95 = vld [vmem:[%s2 + $0x188] sm:$0xff]
    %v96 = vld [vmem:[%s2 + $0x190] sm:$0xff]
    %v97 = vld [vmem:[%s2 + $0x198] sm:$0xff]
    %v98 = vld [vmem:[%s2 + $0x1a0] sm:$0xff]
    %v99 = vld [vmem:[%s2 + $0x1a8] sm:$0xff]
    %v100 = vld [vmem:[%s2 + $0x1b0] sm:$0xff]
    %v101 = vld [vmem:[%s2 + $0x1b8] sm:$0xff]
    %v102 = vld [vmem:[%s2 + $0x1c0] sm:$0xff]
    %v103 = vld [vmem:[%s2 + $0x1c8] sm:$0xff]
    %v104 = vld [vmem:[%s2 + $0x1d0] sm:$0xff]
    %v105 = vld [vmem:[%s2 + $0x1d8] sm:$0xff]
    %v106 = vld [vmem:[%s2 + $0x1e0] sm:$0xff]
    %v107 = vld [vmem:[%s2 + $0x1e8] sm:$0xff]
    %v108 = vld [vmem:[%s2 + $0x1f0] sm:$0xff]
    %v109 = vld [vmem:[%s2 + $0x1f8] sm:$0xff]
    %v110 = vld [vmem:[%s3] sm:$0x3]
    %v112 = vlaneseq
    %v113 = vshrl.u32 %v112, 7
    %v114 = vsub.s32 0, %v113
    %v115 = vrot.slane %v110, %v114
    %v116 = vlaneseq
    %v117 = vshrl.u32 %v116, 7
    %v118 = vsub.s32 1, %v117
    %v119 = vrot.slane %v110, %v118
    %v124 = vunpack.c.l.s4 1983009808
    %v125 = vunpack.c.0.s8 %v124
    %v126 = vlaneseq
    %v127 = vshrl.u32 %v126, 7
    %v128 = vsub.s32 %v125, %v127
    %v129 = vrot.slane %v45, %v128
    %v130 = vcombine.high %v129, %v129
    %133 = vmatprep.subr.mxu0 %v47
    %134 = vmatpush1.msra.mxu0 %v46
    %135 = vmatprep.subr.mxu0 %v49
    %136 = vmatpush1.msra.mxu0 %v48
    %137 = vmatprep.subr.mxu0 %v51
    %138 = vmatpush1.msra.mxu0 %v50
    %139 = vmatprep.subr.mxu0 %v53
    %140 = vmatpush1.msra.mxu0 %v52
    %141 = vmatprep.subr.mxu0 %v55
    %142 = vmatpush1.msra.mxu0 %v54
    %143 = vmatprep.subr.mxu0 %v57
    %144 = vmatpush1.msra.mxu0 %v56
    %145 = vmatprep.subr.mxu0 %v59
    %146 = vmatpush1.msra.mxu0 %v58
    %147 = vmatprep.subr.mxu0 %v61
    %148 = vmatpush1.msra.mxu0 %v60
    %149 = vmatprep.subr.mxu0 %v63
    %150 = vmatpush1.msra.mxu0 %v62
    %151 = vmatprep.subr.mxu0 %v65
    %152 = vmatpush1.msra.mxu0 %v64
    %153 = vmatprep.subr.mxu0 %v67
    %154 = vmatpush1.msra.mxu0 %v66
    %155 = vmatprep.subr.mxu0 %v69
    %156 = vmatpush1.msra.mxu0 %v68
    %157 = vmatprep.subr.mxu0 %v71
    %158 = vmatpush1.msra.mxu0 %v70
    %159 = vmatprep.subr.mxu0 %v73
    %160 = vmatpush1.msra.mxu0 %v72
    %161 = vmatprep.subr.mxu0 %v75
    %162 = vmatpush1.msra.mxu0 %v74
    %163 = vmatprep.subr.mxu0 %v77
    %164 = vmatpush1.msra.mxu0 %v76
    %165 = vmatprep.subr.mxu0 %v79
    %166 = vmatpush1.msra.mxu0 %v78
    %167 = vmatprep.subr.mxu0 %v81
    %168 = vmatpush1.msra.mxu0 %v80
    %169 = vmatprep.subr.mxu0 %v83
    %170 = vmatpush1.msra.mxu0 %v82
    %171 = vmatprep.subr.mxu0 %v85
    %172 = vmatpush1.msra.mxu0 %v84
    %173 = vmatprep.subr.mxu0 %v87
    %174 = vmatpush1.msra.mxu0 %v86
    %175 = vmatprep.subr.mxu0 %v89
    %176 = vmatpush1.msra.mxu0 %v88
    %177 = vmatprep.subr.mxu0 %v91
    %178 = vmatpush1.msra.mxu0 %v90
    %179 = vmatprep.subr.mxu0 %v93
    %180 = vmatpush1.msra.mxu0 %v92
    %181 = vmatprep.subr.mxu0 %v95
    %182 = vmatpush1.msra.mxu0 %v94
    %183 = vmatprep.subr.mxu0 %v97
    %184 = vmatpush1.msra.mxu0 %v96
    %185 = vmatprep.subr.mxu0 %v99
    %186 = vmatpush1.msra.mxu0 %v98
    %187 = vmatprep.subr.mxu0 %v101
    %188 = vmatpush1.msra.mxu0 %v100
    %189 = vmatprep.subr.mxu0 %v103
    %190 = vmatpush1.msra.mxu0 %v102
    %191 = vmatprep.subr.mxu0 %v105
    %192 = vmatpush1.msra.mxu0 %v104
    %193 = vmatprep.subr.mxu0 %v107
    %194 = vmatpush1.msra.mxu0 %v106
    %195 = vmatprep.subr.mxu0 %v109
    %196 = vmatpush1.msra.mxu0 %v108
    %197 = vmatprep.mubr.f32.mxu0 %v130
    %198 = vmatmul.mubr.f32.gmra.mrb[0].mxu0 %v129
    %v199 = vpop.f32.mrb[0].mxu0
    %v200 = vadd.f32 %v115, %v199
    %v201 = vpop.f32.mrb[0].mxu0
    %v202 = vadd.f32 %v119, %v201
    %203 = vdwg.mxu0
    %vm204 = vcmp.gt.f32.partialorder %v200, 0.0
    %vm205 = vcmp.gt.f32.partialorder %v202, 0.0
    %v206 = vmul.f32 %v200, 0.1
    %v207 = vmul.f32 %v202, 0.1
    %v208 = vsel %vm204, %v200, %v206
    %v209 = vsel %vm205, %v202, %v207
    %v210 = vld [vmem:[%s4] sm:$0xff]
    %v211 = vld [vmem:[%s4 + $0x8] sm:$0xff]
    %v212 = vld [vmem:[%s4 + $0x10] sm:$0xff]
    %v213 = vld [vmem:[%s4 + $0x18] sm:$0xff]
    %v214 = vld [vmem:[%s4 + $0x20] sm:$0xff]
    %v215 = vld [vmem:[%s4 + $0x28] sm:$0xff]
    %v216 = vld [vmem:[%s4 + $0x30] sm:$0xff]
    %v217 = vld [vmem:[%s4 + $0x38] sm:$0xff]
    %v218 = vld [vmem:[%s4 + $0x40] sm:$0xff]
    %v219 = vld [vmem:[%s4 + $0x48] sm:$0xff]
    %v220 = vld [vmem:[%s4 + $0x50] sm:$0xff]
    %v221 = vld [vmem:[%s4 + $0x58] sm:$0xff]
    %v222 = vld [vmem:[%s4 + $0x60] sm:$0xff]
    %v223 = vld [vmem:[%s4 + $0x68] sm:$0xff]
    %v224 = vld [vmem:[%s4 + $0x70] sm:$0xff]
    %v225 = vld [vmem:[%s4 + $0x78] sm:$0xff]
    %v226 = vld [vmem:[%s4 + $0x80] sm:$0xff]
    %v227 = vld [vmem:[%s4 + $0x88] sm:$0xff]
    %v228 = vld [vmem:[%s4 + $0x90] sm:$0xff]
    %v229 = vld [vmem:[%s4 + $0x98] sm:$0xff]
    %v230 = vld [vmem:[%s4 + $0xa0] sm:$0xff]
    %v231 = vld [vmem:[%s4 + $0xa8] sm:$0xff]
    %v232 = vld [vmem:[%s4 + $0xb0] sm:$0xff]
    %v233 = vld [vmem:[%s4 + $0xb8] sm:$0xff]
    %v234 = vld [vmem:[%s4 + $0xc0] sm:$0xff]
    %v235 = vld [vmem:[%s4 + $0xc8] sm:$0xff]
    %v236 = vld [vmem:[%s4 + $0xd0] sm:$0xff]
    %v237 = vld [vmem:[%s4 + $0xd8] sm:$0xff]
    %v238 = vld [vmem:[%s4 + $0xe0] sm:$0xff]
    %v239 = vld [vmem:[%s4 + $0xe8] sm:$0xff]
    %v240 = vld [vmem:[%s4 + $0xf0] sm:$0xff]
    %v241 = vld [vmem:[%s4 + $0xf8] sm:$0xff]
    %v242 = vld [vmem:[%s5] sm:$0x1]
    %v244 = vlaneseq
    %v245 = vshrl.u32 %v244, 7
    %v246 = vsub.s32 0, %v245
    %v247 = vrot.slane %v242, %v246
    %249 = vmatprep.subr.mxu0 0.0
    %250 = vmatpush1.msra.mxu0 %v210
    %251 = vmatprep.subr.mxu0 0.0
    %252 = vmatpush1.msra.mxu0 %v211
    %253 = vmatprep.subr.mxu0 0.0
    %254 = vmatpush1.msra.mxu0 %v212
    %255 = vmatprep.subr.mxu0 0.0
    %256 = vmatpush1.msra.mxu0 %v213
    %257 = vmatprep.subr.mxu0 0.0
    %258 = vmatpush1.msra.mxu0 %v214
    %259 = vmatprep.subr.mxu0 0.0
    %260 = vmatpush1.msra.mxu0 %v215
    %261 = vmatprep.subr.mxu0 0.0
    %262 = vmatpush1.msra.mxu0 %v216
    %263 = vmatprep.subr.mxu0 0.0
    %264 = vmatpush1.msra.mxu0 %v217
    %265 = vmatprep.subr.mxu0 0.0
    %266 = vmatpush1.msra.mxu0 %v218
    %267 = vmatprep.subr.mxu0 0.0
    %268 = vmatpush1.msra.mxu0 %v219
    %269 = vmatprep.subr.mxu0 0.0
    %270 = vmatpush1.msra.mxu0 %v220
    %271 = vmatprep.subr.mxu0 0.0
    %272 = vmatpush1.msra.mxu0 %v221
    %273 = vmatprep.subr.mxu0 0.0
    %274 = vmatpush1.msra.mxu0 %v222
    %275 = vmatprep.subr.mxu0 0.0
    %276 = vmatpush1.msra.mxu0 %v223
    %277 = vmatprep.subr.mxu0 0.0
    %278 = vmatpush1.msra.mxu0 %v224
    %279 = vmatprep.subr.mxu0 0.0
    %280 = vmatpush1.msra.mxu0 %v225
    %281 = vmatprep.subr.mxu0 0.0
    %282 = vmatpush1.msra.mxu0 %v226
    %283 = vmatprep.subr.mxu0 0.0
    %284 = vmatpush1.msra.mxu0 %v227
    %285 = vmatprep.subr.mxu0 0.0
    %286 = vmatpush1.msra.mxu0 %v228
    %287 = vmatprep.subr.mxu0 0.0
    %288 = vmatpush1.msra.mxu0 %v229
    %289 = vmatprep.subr.mxu0 0.0
    %290 = vmatpush1.msra.mxu0 %v230
    %291 = vmatprep.subr.mxu0 0.0
    %292 = vmatpush1.msra.mxu0 %v231
    %293 = vmatprep.subr.mxu0 0.0
    %294 = vmatpush1.msra.mxu0 %v232
    %295 = vmatprep.subr.mxu0 0.0
    %296 = vmatpush1.msra.mxu0 %v233
    %297 = vmatprep.subr.mxu0 0.0
    %298 = vmatpush1.msra.mxu0 %v234
    %299 = vmatprep.subr.mxu0 0.0
    %300 = vmatpush1.msra.mxu0 %v235
    %301 = vmatprep.subr.mxu0 0.0
    %302 = vmatpush1.msra.mxu0 %v236
    %303 = vmatprep.subr.mxu0 0.0
    %304 = vmatpush1.msra.mxu0 %v237
    %305 = vmatprep.subr.mxu0 0.0
    %306 = vmatpush1.msra.mxu0 %v238
    %307 = vmatprep.subr.mxu0 0.0
    %308 = vmatpush1.msra.mxu0 %v239
    %309 = vmatprep.subr.mxu0 0.0
    %310 = vmatpush1.msra.mxu0 %v240
    %311 = vmatprep.subr.mxu0 0.0
    %312 = vmatpush1.msra.mxu0 %v241
    %313 = vmatprep.mubr.f32.mxu0 %v209
    %314 = vmatmul.mubr.f32.gmra.mrb[0].mxu0 %v208
    %v315 = vpop.f32.mrb[0].mxu0
    %v316 = vadd.f32 %v247, %v315
    %v317 = vpop.f32.mrb[0].mxu0
    %318 = vdwg.mxu0
    %vm319 = vcmp.gt.f32.partialorder %v316, 0.0
    %v320 = vmul.f32 %v316, 0.1
    %v321 = vsel %vm319, %v316, %v320
    %v322 = vld [vmem:[%s6] sm:$0xff]
    %v323 = vld [vmem:[%s6 + $0x8] sm:$0xff]
    %v324 = vld [vmem:[%s6 + $0x10] sm:$0xff]
    %v325 = vld [vmem:[%s6 + $0x18] sm:$0xff]
    %v326 = vld [vmem:[%s6 + $0x20] sm:$0xff]
    %v327 = vld [vmem:[%s6 + $0x28] sm:$0xff]
    %v328 = vld [vmem:[%s6 + $0x30] sm:$0xff]
    %v329 = vld [vmem:[%s6 + $0x38] sm:$0xff]
    %v330 = vld [vmem:[%s6 + $0x40] sm:$0xff]
    %v331 = vld [vmem:[%s6 + $0x48] sm:$0xff]
    %v332 = vld [vmem:[%s6 + $0x50] sm:$0xff]
    %v333 = vld [vmem:[%s6 + $0x58] sm:$0xff]
    %v334 = vld [vmem:[%s6 + $0x60] sm:$0xff]
    %v335 = vld [vmem:[%s6 + $0x68] sm:$0xff]
    %v336 = vld [vmem:[%s6 + $0x70] sm:$0xff]
    %v337 = vld [vmem:[%s6 + $0x78] sm:$0xff]
    %v338 = vld [vmem:[%s7] sm:$0x1]
    %v340 = vlaneseq
    %v341 = vshrl.u32 %v340, 7
    %v342 = vsub.s32 0, %v341
    %v343 = vrot.slane %v338, %v342
    %345 = vmatprep.subr.mxu0 0.0
    %346 = vmatpush1.msra.mxu0 %v322
    %347 = vmatprep.subr.mxu0 0.0
    %348 = vmatpush1.msra.mxu0 %v323
    %349 = vmatprep.subr.mxu0 0.0
    %350 = vmatpush1.msra.mxu0 %v324
    %351 = vmatprep.subr.mxu0 0.0
    %352 = vmatpush1.msra.mxu0 %v325
    %353 = vmatprep.subr.mxu0 0.0
    %354 = vmatpush1.msra.mxu0 %v326
    %355 = vmatprep.subr.mxu0 0.0
    %356 = vmatpush1.msra.mxu0 %v327
    %357 = vmatprep.subr.mxu0 0.0
    %358 = vmatpush1.msra.mxu0 %v328
    %359 = vmatprep.subr.mxu0 0.0
    %360 = vmatpush1.msra.mxu0 %v329
    %361 = vmatprep.subr.mxu0 0.0
    %362 = vmatpush1.msra.mxu0 %v330
    %363 = vmatprep.subr.mxu0 0.0
    %364 = vmatpush1.msra.mxu0 %v331
    %365 = vmatprep.subr.mxu0 0.0
    %366 = vmatpush1.msra.mxu0 %v332
    %367 = vmatprep.subr.mxu0 0.0
    %368 = vmatpush1.msra.mxu0 %v333
    %369 = vmatprep.subr.mxu0 0.0
    %370 = vmatpush1.msra.mxu0 %v334
    %371 = vmatprep.subr.mxu0 0.0
    %372 = vmatpush1.msra.mxu0 %v335
    %373 = vmatprep.subr.mxu0 0.0
    %374 = vmatpush1.msra.mxu0 %v336
    %375 = vmatprep.subr.mxu0 0.0
    %376 = vmatpush1.msra.mxu0 %v337
    %377 = vmatprep.subr.mxu0 0.0
    %378 = vmatpush1.msra.mxu0 0.0
    %379 = vmatprep.subr.mxu0 0.0
    %380 = vmatpush1.msra.mxu0 0.0
    %381 = vmatprep.subr.mxu0 0.0
    %382 = vmatpush1.msra.mxu0 0.0
    %383 = vmatprep.subr.mxu0 0.0
    %384 = vmatpush1.msra.mxu0 0.0
    %385 = vmatprep.subr.mxu0 0.0
    %386 = vmatpush1.msra.mxu0 0.0
    %387 = vmatprep.subr.mxu0 0.0
    %388 = vmatpush1.msra.mxu0 0.0
    %389 = vmatprep.subr.mxu0 0.0
    %390 = vmatpush1.msra.mxu0 0.0
    %391 = vmatprep.subr.mxu0 0.0
    %392 = vmatpush1.msra.mxu0 0.0
    %393 = vmatprep.subr.mxu0 0.0
    %394 = vmatpush1.msra.mxu0 0.0
    %395 = vmatprep.subr.mxu0 0.0
    %396 = vmatpush1.msra.mxu0 0.0
    %397 = vmatprep.subr.mxu0 0.0
    %398 = vmatpush1.msra.mxu0 0.0
    %399 = vmatprep.subr.mxu0 0.0
    %400 = vmatpush1.msra.mxu0 0.0
    %401 = vmatprep.subr.mxu0 0.0
    %402 = vmatpush1.msra.mxu0 0.0
    %403 = vmatprep.subr.mxu0 0.0
    %404 = vmatpush1.msra.mxu0 0.0
    %405 = vmatprep.subr.mxu0 0.0
    %406 = vmatpush1.msra.mxu0 0.0
    %407 = vmatprep.subr.mxu0 0.0
    %408 = vmatpush1.msra.mxu0 0.0
    %409 = vmatprep.mubr.f32.mxu0 0.0
    %410 = vmatmul.mubr.f32.gmra.mrb[0].mxu0 %v321
    %v411 = vpop.f32.mrb[0].mxu0
    %v412 = vadd.f32 %v343, %v411
    %v413 = vpop.f32.mrb[0].mxu0
    %414 = vdwg.mxu0
    %vm415 = vcmp.gt.f32.partialorder %v412, 0.0
    %v416 = vmul.f32 %v412, 0.1
    %v417 = vsel %vm415, %v412, %v416
    %v418 = vld [vmem:[%s8] sm:$0xff]
    %v419 = vld [vmem:[%s8 + $0x8] sm:$0xff]
    %v420 = vld [vmem:[%s8 + $0x10] sm:$0xff]
    %v421 = vld [vmem:[%s8 + $0x18] sm:$0xff]
    %v422 = vld [vmem:[%s8 + $0x20] sm:$0xff]
    %v423 = vld [vmem:[%s8 + $0x28] sm:$0xff]
    %v424 = vld [vmem:[%s8 + $0x30] sm:$0xff]
    %v425 = vld [vmem:[%s8 + $0x38] sm:$0xff]
    %v426 = vld [vmem:[%s1] sm:$0x3]
    %v427 = vld [vmem:[%s9] sm:$0xff]
    %vm428 = vcmask 64512
    %v430 = vsel %vm428, %v426, 0
    %432 = vmatprep.subr.mxu0 0.0
    %433 = vmatpush1.msra.mxu0 %v427
    %434 = vmatprep.subr.mxu0 0.0
    %435 = vmatpush1.msra.mxu0 0.0
    %436 = vmatprep.subr.mxu0 0.0
    %437 = vmatpush1.msra.mxu0 0.0
    %438 = vmatprep.subr.mxu0 0.0
    %439 = vmatpush1.msra.mxu0 0.0
    %440 = vmatprep.subr.mxu0 0.0
    %441 = vmatpush1.msra.mxu0 0.0
    %442 = vmatprep.subr.mxu0 0.0
    %443 = vmatpush1.msra.mxu0 0.0
    %444 = vmatprep.subr.mxu0 0.0
    %445 = vmatpush1.msra.mxu0 0.0
    %446 = vmatprep.subr.mxu0 0.0
    %447 = vmatpush1.msra.mxu0 0.0
    %448 = vmatprep.subr.mxu0 0.0
    %449 = vmatpush1.msra.mxu0 0.0
    %450 = vmatprep.subr.mxu0 0.0
    %451 = vmatpush1.msra.mxu0 0.0
    %452 = vmatprep.subr.mxu0 0.0
    %453 = vmatpush1.msra.mxu0 0.0
    %454 = vmatprep.subr.mxu0 0.0
    %455 = vmatpush1.msra.mxu0 0.0
    %456 = vmatprep.subr.mxu0 0.0
    %457 = vmatpush1.msra.mxu0 0.0
    %458 = vmatprep.subr.mxu0 0.0
    %459 = vmatpush1.msra.mxu0 0.0
    %460 = vmatprep.subr.mxu0 0.0
    %461 = vmatpush1.msra.mxu0 0.0
    %462 = vmatprep.subr.mxu0 0.0
    %463 = vmatpush1.msra.mxu0 0.0
    %464 = vmatprep.subr.mxu0 0.0
    %465 = vmatpush1.msra.mxu0 0.0
    %466 = vmatprep.subr.mxu0 0.0
    %467 = vmatpush1.msra.mxu0 0.0
    %468 = vmatprep.subr.mxu0 0.0
    %469 = vmatpush1.msra.mxu0 0.0
    %470 = vmatprep.subr.mxu0 0.0
    %471 = vmatpush1.msra.mxu0 0.0
    %472 = vmatprep.subr.mxu0 0.0
    %473 = vmatpush1.msra.mxu0 0.0
    %474 = vmatprep.subr.mxu0 0.0
    %475 = vmatpush1.msra.mxu0 0.0
    %476 = vmatprep.subr.mxu0 0.0
    %477 = vmatpush1.msra.mxu0 0.0
    %478 = vmatprep.subr.mxu0 0.0
    %479 = vmatpush1.msra.mxu0 0.0
    %480 = vmatprep.subr.mxu0 0.0
    %481 = vmatpush1.msra.mxu0 0.0
    %482 = vmatprep.subr.mxu0 0.0
    %483 = vmatpush1.msra.mxu0 0.0
    %484 = vmatprep.subr.mxu0 0.0
    %485 = vmatpush1.msra.mxu0 0.0
    %486 = vmatprep.subr.mxu0 0.0
    %487 = vmatpush1.msra.mxu0 0.0
    %488 = vmatprep.subr.mxu0 0.0
    %489 = vmatpush1.msra.mxu0 0.0
    %490 = vmatprep.subr.mxu0 0.0
    %491 = vmatpush1.msra.mxu0 0.0
    %492 = vmatprep.subr.mxu0 0.0
    %493 = vmatpush1.msra.mxu0 0.0
    %494 = vmatprep.subr.mxu0 0.0
    %495 = vmatpush1.msra.mxu0 0.0
    %496 = vmatprep.mubr.f32.mxu0 0.0
    %497 = vmatmul.mubr.f32.gmra.mrb[0].mxu0 %v430
    %v498 = vpop.f32.mrb[0].mxu0
    %v499 = vadd.f32 0.0, %v498
    %v500 = vpop.f32.mrb[0].mxu0
    %501 = vdwg.mxu0
    %vm502 = vcmask 523264
    %v504 = vsel %vm502, %v417, 0
    %506 = vmatprep.subr.mxu0 0.0
    %507 = vmatpush1.msra.mxu0 %v418
    %508 = vmatprep.subr.mxu0 0.0
    %509 = vmatpush1.msra.mxu0 %v419
    %510 = vmatprep.subr.mxu0 0.0
    %511 = vmatpush1.msra.mxu0 %v420
    %512 = vmatprep.subr.mxu0 0.0
    %513 = vmatpush1.msra.mxu0 %v421
    %514 = vmatprep.subr.mxu0 0.0
    %515 = vmatpush1.msra.mxu0 %v422
    %516 = vmatprep.subr.mxu0 0.0
    %517 = vmatpush1.msra.mxu0 %v423
    %518 = vmatprep.subr.mxu0 0.0
    %519 = vmatpush1.msra.mxu0 %v424
    %520 = vmatprep.subr.mxu0 0.0
    %521 = vmatpush1.msra.mxu0 %v425
    %522 = vmatprep.subr.mxu0 0.0
    %523 = vmatpush1.msra.mxu0 0.0
    %524 = vmatprep.subr.mxu0 0.0
    %525 = vmatpush1.msra.mxu0 0.0
    %526 = vmatprep.subr.mxu0 0.0
    %527 = vmatpush1.msra.mxu0 0.0
    %528 = vmatprep.subr.mxu0 0.0
    %529 = vmatpush1.msra.mxu0 0.0
    %530 = vmatprep.subr.mxu0 0.0
    %531 = vmatpush1.msra.mxu0 0.0
    %532 = vmatprep.subr.mxu0 0.0
    %533 = vmatpush1.msra.mxu0 0.0
    %534 = vmatprep.subr.mxu0 0.0
    %535 = vmatpush1.msra.mxu0 0.0
    %536 = vmatprep.subr.mxu0 0.0
    %537 = vmatpush1.msra.mxu0 0.0
    %538 = vmatprep.subr.mxu0 0.0
    %539 = vmatpush1.msra.mxu0 0.0
    %540 = vmatprep.subr.mxu0 0.0
    %541 = vmatpush1.msra.mxu0 0.0
    %542 = vmatprep.subr.mxu0 0.0
    %543 = vmatpush1.msra.mxu0 0.0
    %544 = vmatprep.subr.mxu0 0.0
    %545 = vmatpush1.msra.mxu0 0.0
    %546 = vmatprep.subr.mxu0 0.0
    %547 = vmatpush1.msra.mxu0 0.0
    %548 = vmatprep.subr.mxu0 0.0
    %549 = vmatpush1.msra.mxu0 0.0
    %550 = vmatprep.subr.mxu0 0.0
    %551 = vmatpush1.msra.mxu0 0.0
    %552 = vmatprep.subr.mxu0 0.0
    %553 = vmatpush1.msra.mxu0 0.0
    %554 = vmatprep.subr.mxu0 0.0
    %555 = vmatpush1.msra.mxu0 0.0
    %556 = vmatprep.subr.mxu0 0.0
    %557 = vmatpush1.msra.mxu0 0.0
    %558 = vmatprep.subr.mxu0 0.0
    %559 = vmatpush1.msra.mxu0 0.0
    %560 = vmatprep.subr.mxu0 0.0
    %561 = vmatpush1.msra.mxu0 0.0
    %562 = vmatprep.subr.mxu0 0.0
    %563 = vmatpush1.msra.mxu0 0.0
    %564 = vmatprep.subr.mxu0 0.0
    %565 = vmatpush1.msra.mxu0 0.0
    %566 = vmatprep.subr.mxu0 0.0
    %567 = vmatpush1.msra.mxu0 0.0
    %568 = vmatprep.subr.mxu0 0.0
    %569 = vmatpush1.msra.mxu0 0.0
    %570 = vmatprep.mubr.f32.mxu0 0.0
    %571 = vmatmul.mubr.f32.gmra.mrb[0].mxu0 %v504
    %v572 = vpop.f32.mrb[0].mxu0
    %v573 = vadd.f32 %v499, %v572
    %v574 = vpop.f32.mrb[0].mxu0
    %575 = vdwg.mxu0
    %v576 = vld [vmem:[%s10] sm:$0x1]
    %v578 = vlaneseq
    %v579 = vshrl.u32 %v578, 7
    %v580 = vsub.s32 0, %v579
    %v581 = vrot.slane %v576, %v580
    %v583 = vadd.f32 %v573, %v581
    %vm584 = vcmp.gt.f32.partialorder %v583, 0.0
    %v585 = vmul.f32 %v583, 0.1
    %v586 = vsel %vm584, %v583, %v585
    %v587 = vld [vmem:[%s11] sm:$0xff]
    %v588 = vld [vmem:[%s11 + $0x8] sm:$0xff]
    %v589 = vld [vmem:[%s11 + $0x10] sm:$0xff]
    %v590 = vld [vmem:[%s11 + $0x18] sm:$0xff]
    %v591 = vld [vmem:[%s12] sm:$0x1]
    %v593 = vlaneseq
    %v594 = vshrl.u32 %v593, 7
    %v595 = vsub.s32 0, %v594
    %v596 = vrot.slane %v591, %v595
    %vm598 = vcmask 261120
    %v600 = vsel %vm598, %v586, 0
    %602 = vmatprep.subr.mxu0 0.0
    %603 = vmatpush1.msra.mxu0 %v587
    %604 = vmatprep.subr.mxu0 0.0
    %605 = vmatpush1.msra.mxu0 %v588
    %606 = vmatprep.subr.mxu0 0.0
    %607 = vmatpush1.msra.mxu0 %v589
    %608 = vmatprep.subr.mxu0 0.0
    %609 = vmatpush1.msra.mxu0 %v590
    %610 = vmatprep.subr.mxu0 0.0
    %611 = vmatpush1.msra.mxu0 0.0
    %612 = vmatprep.subr.mxu0 0.0
    %613 = vmatpush1.msra.mxu0 0.0
    %614 = vmatprep.subr.mxu0 0.0
    %615 = vmatpush1.msra.mxu0 0.0
    %616 = vmatprep.subr.mxu0 0.0
    %617 = vmatpush1.msra.mxu0 0.0
    %618 = vmatprep.subr.mxu0 0.0
    %619 = vmatpush1.msra.mxu0 0.0
    %620 = vmatprep.subr.mxu0 0.0
    %621 = vmatpush1.msra.mxu0 0.0
    %622 = vmatprep.subr.mxu0 0.0
    %623 = vmatpush1.msra.mxu0 0.0
    %624 = vmatprep.subr.mxu0 0.0
    %625 = vmatpush1.msra.mxu0 0.0
    %626 = vmatprep.subr.mxu0 0.0
    %627 = vmatpush1.msra.mxu0 0.0
    %628 = vmatprep.subr.mxu0 0.0
    %629 = vmatpush1.msra.mxu0 0.0
    %630 = vmatprep.subr.mxu0 0.0
    %631 = vmatpush1.msra.mxu0 0.0
    %632 = vmatprep.subr.mxu0 0.0
    %633 = vmatpush1.msra.mxu0 0.0
    %634 = vmatprep.subr.mxu0 0.0
    %635 = vmatpush1.msra.mxu0 0.0
    %636 = vmatprep.subr.mxu0 0.0
    %637 = vmatpush1.msra.mxu0 0.0
    %638 = vmatprep.subr.mxu0 0.0
    %639 = vmatpush1.msra.mxu0 0.0
    %640 = vmatprep.subr.mxu0 0.0
    %641 = vmatpush1.msra.mxu0 0.0
    %642 = vmatprep.subr.mxu0 0.0
    %643 = vmatpush1.msra.mxu0 0.0
    %644 = vmatprep.subr.mxu0 0.0
    %645 = vmatpush1.msra.mxu0 0.0
    %646 = vmatprep.subr.mxu0 0.0
    %647 = vmatpush1.msra.mxu0 0.0
    %648 = vmatprep.subr.mxu0 0.0
    %649 = vmatpush1.msra.mxu0 0.0
    %650 = vmatprep.subr.mxu0 0.0
    %651 = vmatpush1.msra.mxu0 0.0
    %652 = vmatprep.subr.mxu0 0.0
    %653 = vmatpush1.msra.mxu0 0.0
    %654 = vmatprep.subr.mxu0 0.0
    %655 = vmatpush1.msra.mxu0 0.0
    %656 = vmatprep.subr.mxu0 0.0
    %657 = vmatpush1.msra.mxu0 0.0
    %658 = vmatprep.subr.mxu0 0.0
    %659 = vmatpush1.msra.mxu0 0.0
    %660 = vmatprep.subr.mxu0 0.0
    %661 = vmatpush1.msra.mxu0 0.0
    %662 = vmatprep.subr.mxu0 0.0
    %663 = vmatpush1.msra.mxu0 0.0
    %664 = vmatprep.subr.mxu0 0.0
    %665 = vmatpush1.msra.mxu0 0.0
    %666 = vmatprep.mubr.f32.mxu0 0.0
    %667 = vmatmul.mubr.f32.gmra.mrb[0].mxu0 %v600
    %v668 = vpop.f32.mrb[0].mxu0
    %v669 = vadd.f32 %v596, %v668
    %v670 = vpop.f32.mrb[0].mxu0
    %671 = vdwg.mxu0
    %vm672 = vcmask 41984
    %673 = vst.msk [vmem:[#allocation2] sm:$0x3] %vm672, %v669
    // Predicated region
    $region54: #{simple_model_forward.1} parent=1 // pred_check
      _
    $region55: #{simple_model_forward.1} parent=1 // pred_check_branch
      %675 = sbr.rel (0) target = $region57
    $region56: #{simple_model_forward.1} parent=1 // pred_region
      %s677 = ssub.s32 32, 32
      %678 = vsyncadd [#allocation3], %s677
      %s680 = sshll.u32 [#allocation2], 4
      %s681 = int_to_ptr.vmem [resolvable:$true] %s680
      %683 = dma.vmem_to_hbm [thread:$0]  %s681, 32, %s13, [#allocation3]
    $region57: #{simple_model_forward.1} parent=1 // pred_fallthru
      _
    // Predicated region
    $region58: #{simple_model_forward.1} parent=1 // pred_check
      _
    $region59: #{simple_model_forward.1} parent=1 // pred_check_branch
      %685 = sbr.rel (0) target = $region61
    $region60: #{simple_model_forward.1} parent=1 // pred_region
      %686 = dma.done [#allocation3], 32
    $region61: #{simple_model_forward.1} parent=1 // pred_fallthru
      _
    %687 = vsyncpa [#allocation3], 1

</llo_original>
